<compile_context>
chip_gen: v6e
topology: v6e:2x2x1
jax: 0.10.0
libtpu: 0.0.40
codegen_flags: <defaults>
</compile_context>

<pallas_src>
import jax
import jax.numpy as jnp
from jax import lax
from jax.experimental import pallas as pl
from jax.experimental.pallas import tpu as pltpu

BN_EPS = 1e-5
_LANE = 128
_DEFAULT_TILE_M = 2048                  # rows per grid step (review: 512-2048+)
_VMEM_LIMIT_BYTES = 32 * 1024 * 1024    # explicit, safe on v5e/v6e/v7x


def _round_up(x, m):
    return ((x + m - 1) // m) * m


def _stats_kernel(x_ref, w_ref, stats_ref):
    """Pass 1: per-tile conv-as-matmul + partial sum / sum-of-squares.

    x_ref: (TILE_M, K) bf16  VMEM
    w_ref: (K, N)      bf16  VMEM (resident across tiles)
    stats_ref: (1, 2)  f32   SMEM -> [partial_sum, partial_sum_sq]
    Zero-padded rows of x contribute exactly 0 to both partials.
    """
    y = jnp.dot(x_ref[...], w_ref[...], preferred_element_type=jnp.float32)
    stats_ref[0, 0] = jnp.sum(y)
    stats_ref[0, 1] = jnp.sum(y * y)


def _normalize_kernel(coef_ref, x_ref, w_ref, o_ref):
    """Pass 2: recompute the tiny matmul, apply fused BN scale/shift + ReLU.

    coef_ref: (2,) f32 SMEM -> [scale, shift] with BN stats + gamma/beta folded.
    """
    y = jnp.dot(x_ref[...], w_ref[...], preferred_element_type=jnp.float32)
    z = y * coef_ref[0] + coef_ref[1]
    o_ref[...] = jnp.maximum(z, 0.0).astype(o_ref.dtype)


def special_shared_layer(x, conv_weight, gamma, beta, *, tile_m=_DEFAULT_TILE_M):
    """x: (B, 1, P, K) NCHW float32. conv_weight: (N, 1, 1, K). Returns (B, 1, P, N)."""
    B, C_in, P, K = x.shape
    assert C_in == 1
    N = conv_weight.shape[0]
    assert conv_weight.shape == (N, 1, 1, K)

    M = B * P
    # bf16 MXU inputs (f32 accumulation) -> halves the dominant x DMA bytes and
    # uses the native bf16 MXU path on all three generations.
    x2d = x.reshape(M, K).astype(jnp.bfloat16)                   # (M, K)
    w2d = conv_weight.reshape(N, K).T.astype(jnp.bfloat16)       # (K, N)

    # Tile the row dimension; pad with zero rows (zero rows -> zero conv output
    # -> zero contribution to sum / sum-of-squares; true count used below).
    if M <= tile_m:
        tile_m = _round_up(max(M, 8), _LANE)
    m_pad = _round_up(M, tile_m)
    if m_pad != M:
        x2d = jnp.pad(x2d, ((0, m_pad - M), (0, 0)))
    num_tiles = m_pad // tile_m

    compiler_params = pltpu.CompilerParams(
        dimension_semantics=("parallel",),          # v7x: split tiles over 2 TCs
        vmem_limit_bytes=_VMEM_LIMIT_BYTES,
    )

    # ---- Pass 1: per-tile partial statistics of the conv output ------------
    stats = pl.pallas_call(
        _stats_kernel,
        out_shape=jax.ShapeDtypeStruct((num_tiles, 2), jnp.float32),
        grid=(num_tiles,),
        in_specs=[
            pl.BlockSpec((tile_m, K), lambda i: (i, 0)),
            pl.BlockSpec((K, N), lambda i: (0, 0)),
        ],
        out_specs=pl.BlockSpec((1, 2), lambda i: (i, 0),
                               memory_space=pltpu.MemorySpace.SMEM),
        compiler_params=compiler_params,
    )(x2d, w2d)

    # Combine per-tile partials (tiny XLA op) and fold BatchNorm2d(1) training
    # statistics + affine params into a single (scale, shift) pair.
    total = jnp.sum(stats, axis=0)                         # (2,)
    count = float(M * N)                                   # true element count
    mu = total[0] / count
    var = jnp.maximum(total[1] / count - mu * mu, 0.0)     # biased variance
    inv_std = lax.rsqrt(var + BN_EPS)
    scale = inv_std * gamma[0].astype(jnp.float32)
    shift = beta[0].astype(jnp.float32) - mu * scale
    coef = jnp.stack([scale, shift])                       # (2,) f32
    # TODO(synk): BatchNorm running_mean/running_var buffer updates (training
    # side-effect) are not modeled; only the forward output (batch statistics).

    # ---- Pass 2: recompute matmul + fused BN/ReLU epilogue ------------------
    out_pad = pl.pallas_call(
        _normalize_kernel,
        out_shape=jax.ShapeDtypeStruct((m_pad, N), jnp.float32),
        grid=(num_tiles,),
        in_specs=[
            pl.BlockSpec((2,), lambda i: (0,),
                         memory_space=pltpu.MemorySpace.SMEM),   # coef
            pl.BlockSpec((tile_m, K), lambda i: (i, 0)),
            pl.BlockSpec((K, N), lambda i: (0, 0)),
        ],
        out_specs=pl.BlockSpec((tile_m, N), lambda i: (i, 0)),
        compiler_params=compiler_params,
    )(coef, x2d, w2d)

    out2d = out_pad[:M]
    # out2d[b*P + p, c] == torch output[b, 0, p, c]
    return out2d.reshape(B, P, N)[:, None, :, :]


def _reference(x, conv_weight, gamma, beta, *, bf16_inputs=True):
    """Pure-JAX reference of the PyTorch forward (training-mode BN).

    With bf16_inputs=True the matmul inputs are rounded to bf16 to mirror the
    kernel's MXU inputs (accumulation is f32 in both paths).
    """
    B, _, P, K = x.shape
    N = conv_weight.shape[0]
    w = conv_weight.reshape(N, K)
    if bf16_inputs:
        x = x.astype(jnp.bfloat16).astype(jnp.float32)
        w = w.astype(jnp.bfloat16).astype(jnp.float32)
    y = jnp.einsum("bpk,nk->bpn", x[:, 0], w,
                   precision=lax.Precision.HIGHEST)    # (B, P, N)
    y = y[:, None, :, :]                               # (B, 1, P, N)
    mu = jnp.mean(y)
    var = jnp.mean((y - mu) ** 2)
    z = (y - mu) / jnp.sqrt(var + BN_EPS) * gamma[0] + beta[0]
    return jnp.maximum(z, 0.0)


if __name__ == "__main__":
    key = jax.random.PRNGKey(0)
    k_x, k_w = jax.random.split(key)

    B, P, in_p_size, out_p_size = 2, 16, 16, 32

    # Input: NCHW (B, 1, num_points, in_p_size)
    x = jax.random.normal(k_x, (B, 1, P, in_p_size), dtype=jnp.float32)

    # Conv2d weight (out, in=1, kh=1, kw=in_p_size), PyTorch-style uniform init.
    bound = 1.0 / jnp.sqrt(jnp.float32(in_p_size))
    conv_weight = jax.random.uniform(
        k_w, (out_p_size, 1, 1, in_p_size), dtype=jnp.float32,
        minval=-bound, maxval=bound)

    # BatchNorm2d(1) affine params at init: gamma=1, beta=0.
    gamma = jnp.ones((1,), dtype=jnp.float32)
    beta = jnp.zeros((1,), dtype=jnp.float32)

    out = special_shared_layer(x, conv_weight, gamma, beta)
    out = jax.block_until_ready(out)

    assert out.shape == (B, 1, P, out_p_size), out.shape

    # Tight check vs a reference using the same bf16-rounded matmul inputs.
    ref_bf16 = _reference(x, conv_weight, gamma, beta, bf16_inputs=True)
    assert jnp.allclose(out, ref_bf16, rtol=1e-4, atol=1e-4), "mismatch vs bf16 reference"

    # Looser sanity check vs the full-f32 PyTorch-equivalent math.
    ref_f32 = _reference(x, conv_weight, gamma, beta, bf16_inputs=False)
    assert jnp.allclose(out, ref_f32, rtol=2e-2, atol=2e-2), "mismatch vs f32 reference"

    print("KERNEL_OK")
</pallas_src>

<mosaic_0001>
module attributes {stable_mosaic.version = 11 : i64} {
  func.func @_stats_kernel(%arg0: i32, %arg1: memref<128x16xbf16, #tpu.memory_space<vmem>>, %arg2: memref<16x32xbf16, #tpu.memory_space<vmem>>, %arg3: memref<1x2xf32, #tpu.memory_space<smem>>) attributes {dimension_semantics = [#tpu.dimension_semantics<parallel>], iteration_bounds = array<i64: 1>, scalar_prefetch = 0 : i64, scratch_operands = 0 : i64, tpu.core_type = #tpu.core_type<tc>, window_params = [{transform_indices = @transform_0, window_bounds = array<i64: 128, 16>}, {pipeline_mode = #tpu.pipeline_mode<synchronous>, transform_indices = @transform_1, window_bounds = array<i64: 16, 32>}, {transform_indices = @transform_2, window_bounds = array<i64: 1, 2>}]} {
    %c0 = arith.constant 0 : index
    %c0_0 = arith.constant 0 : index
    %0 = vector.load %arg1[%c0, %c0_0] : memref<128x16xbf16, #tpu.memory_space<vmem>>, vector<128x16xbf16>
    %c0_1 = arith.constant 0 : index
    %c0_2 = arith.constant 0 : index
    %1 = vector.load %arg2[%c0_1, %c0_2] : memref<16x32xbf16, #tpu.memory_space<vmem>>, vector<16x32xbf16>
    %cst = arith.constant dense<0.000000e+00> : vector<128x32xf32>
    %2 = tpu.matmul %0, %1, %cst {dimension_numbers = #tpu.dot_dimension_numbers<[1], [0], [0], [1], [0, 0, 1, 1], [], []>} : vector<128x16xbf16>, vector<16x32xbf16>, vector<128x32xf32> -> vector<128x32xf32>
    %3 = vector.shape_cast %2 : vector<128x32xf32> to vector<1x128x32xf32>
    %cst_3 = arith.constant dense<0.000000e+00> : vector<1xf32>
    %4 = vector.multi_reduction <add>, %3, %cst_3 [1, 2] : vector<1x128x32xf32> to vector<1xf32>
    %5 = vector.shape_cast %4 : vector<1xf32> to vector<1x1x1xf32>
    %6 = vector.extract %5[0, 0, 0] : f32 from vector<1x1x1xf32>
    %c0_4 = arith.constant 0 : index
    %c0_5 = arith.constant 0 : index
    %7 = memref.load %arg3[%c0_4, %c0_5] : memref<1x2xf32, #tpu.memory_space<smem>>
    memref.store %6, %arg3[%c0_4, %c0_5] : memref<1x2xf32, #tpu.memory_space<smem>>
    %8 = arith.mulf %2, %2 : vector<128x32xf32>
    %9 = vector.shape_cast %8 : vector<128x32xf32> to vector<1x128x32xf32>
    %cst_6 = arith.constant dense<0.000000e+00> : vector<1xf32>
    %10 = vector.multi_reduction <add>, %9, %cst_6 [1, 2] : vector<1x128x32xf32> to vector<1xf32>
    %11 = vector.shape_cast %10 : vector<1xf32> to vector<1x1x1xf32>
    %12 = vector.extract %11[0, 0, 0] : f32 from vector<1x1x1xf32>
    %c0_7 = arith.constant 0 : index
    %c1 = arith.constant 1 : index
    %13 = memref.load %arg3[%c0_7, %c1] : memref<1x2xf32, #tpu.memory_space<smem>>
    memref.store %12, %arg3[%c0_7, %c1] : memref<1x2xf32, #tpu.memory_space<smem>>
    return
  }
  func.func @transform_0(%arg0: i32) -> (i32, i32) {
    %c0_i32 = arith.constant 0 : i32
    %c0_i32_0 = arith.constant 0 : i32
    return %arg0, %c0_i32 : i32, i32
  }
  func.func @transform_1(%arg0: i32) -> (i32, i32) {
    %c0_i32 = arith.constant 0 : i32
    %c0_i32_0 = arith.constant 0 : i32
    %c0_i32_1 = arith.constant 0 : i32
    return %c0_i32, %c0_i32_0 : i32, i32
  }
  func.func @transform_2(%arg0: i32) -> (i32, i32) {
    %c0_i32 = arith.constant 0 : i32
    %c0_i32_0 = arith.constant 0 : i32
    return %arg0, %c0_i32 : i32, i32
  }
}

</mosaic_0001>

<llo_original>
// kernel: tpu_custom_call.1
$region0: #{tpu_custom_call.1}
  #allocation0 [shape = 'u32[]', space=smem, size = 0x4, offset = 0x4, fixed_abs, tag = 'smem constant byte address 0x4 - core index']
  #allocation1 [shape = 'u32[144,128]{1,0:T(1,128)}', space=vmem, size = 0x12000, scoped, tag = 'internal scratch']
  %s0 = inlined_call_operand.vmem [shape: bf16[128,16], index: 0, kind: input, shape index: {}]
  %s1 = inlined_call_operand.vmem [shape: bf16[16,32], index: 1, kind: input, shape index: {}]
  %s2 = inlined_call_operand.hbm [shape: f32[1,2], index: 2, kind: output, shape index: {}]
  %s3 = sld [smem:[#allocation0]]
  $region18: #{tpu_custom_call.1} parent=0
    _
  %s5 = ssub.s32 1, %s3
  %s6 = scalar_select 0, %s5, %s3
  $region1: #{tpu_custom_call.1} parent=0
    #allocation2 [shape = 'u8[512]{0}', space=smem, size = 0x200, scoped, tag = 'output window, operand 0, single buffered']
    #allocation3 [shape = 's32[1]{0}', space=sflag, size = 0x4, scoped, tag = 'scoped memory for tpu_custom_call.1']
    %7 = vsyncpa [#allocation3], 0
    // Predicated region
    $region2: #{tpu_custom_call.1} parent=1 // pred_check
      _
    $region3: #{tpu_custom_call.1} parent=1 // pred_check_branch
      %9 = sbr.rel (0) target = $region5
    $region4: #{tpu_custom_call.1} parent=1 // pred_region
      _
    $region5: #{tpu_custom_call.1} parent=1 // pred_fallthru
      _
    // Predicated region
    $region6: #{tpu_custom_call.1} parent=1 // pred_check
      _
    $region7: #{tpu_custom_call.1} parent=1 // pred_check_branch
      %11 = sbr.rel (0) target = $region9
    $region8: #{tpu_custom_call.1} parent=1 // pred_region
      _
    $region9: #{tpu_custom_call.1} parent=1 // pred_fallthru
      _
    %v13 = vld [vmem:[%s0] sm:$0xf]
    %v14 = vld [vmem:[%s0 + $0x4] sm:$0xf]
    %v15 = vld [vmem:[%s0 + $0x8] sm:$0xf]
    %v16 = vld [vmem:[%s0 + $0xc] sm:$0xf]
    %v17 = vld [vmem:[%s0 + $0x10] sm:$0xf]
    %v18 = vld [vmem:[%s0 + $0x14] sm:$0xf]
    %v19 = vld [vmem:[%s0 + $0x18] sm:$0xf]
    %v20 = vld [vmem:[%s0 + $0x1c] sm:$0xf]
    %v21 = vld [vmem:[%s0 + $0x20] sm:$0xf]
    %v22 = vld [vmem:[%s0 + $0x24] sm:$0xf]
    %v23 = vld [vmem:[%s0 + $0x28] sm:$0xf]
    %v24 = vld [vmem:[%s0 + $0x2c] sm:$0xf]
    %v25 = vld [vmem:[%s0 + $0x30] sm:$0xf]
    %v26 = vld [vmem:[%s0 + $0x34] sm:$0xf]
    %v27 = vld [vmem:[%s0 + $0x38] sm:$0xf]
    %v28 = vld [vmem:[%s0 + $0x3c] sm:$0xf]
    %v29 = vld [vmem:[%s1] sm:$0xf]
    %v30 = vld [vmem:[%s1 + $0x4] sm:$0xf]
    %v47 = vunpack.c.l.b16 %v13
    %v48 = vunpack.c.l.b16 %v14
    %v49 = vunpack.c.l.b16 %v15
    %v50 = vunpack.c.l.b16 %v16
    %v51 = vunpack.c.l.b16 %v17
    %v52 = vunpack.c.l.b16 %v18
    %v53 = vunpack.c.l.b16 %v19
    %v54 = vunpack.c.l.b16 %v20
    %v55 = vunpack.c.l.b16 %v21
    %v56 = vunpack.c.l.b16 %v22
    %v57 = vunpack.c.l.b16 %v23
    %v58 = vunpack.c.l.b16 %v24
    %v59 = vunpack.c.l.b16 %v25
    %v60 = vunpack.c.l.b16 %v26
    %v61 = vunpack.c.l.b16 %v27
    %v62 = vunpack.c.l.b16 %v28
    %v63 = vpack.c.b16 %v48, %v47
    %v64 = vpack.c.b16 %v50, %v49
    %v65 = vpack.c.b16 %v52, %v51
    %v66 = vpack.c.b16 %v54, %v53
    %v67 = vpack.c.b16 %v56, %v55
    %v68 = vpack.c.b16 %v58, %v57
    %v69 = vpack.c.b16 %v60, %v59
    %v70 = vpack.c.b16 %v62, %v61
    %v73 = vunpack.c.l.b16 %v29
    %v74 = vunpack.c.l.b16 %v30
    %v75 = vpack.c.b16 %v74, %v73
    %vm77 = vcmask 130048
    %v79 = vsel %vm77, %v63, 0
    %v82 = vsel %vm77, %v64, 0
    %v85 = vsel %vm77, %v65, 0
    %v88 = vsel %vm77, %v66, 0
    %v91 = vsel %vm77, %v67, 0
    %v94 = vsel %vm77, %v68, 0
    %v97 = vsel %vm77, %v69, 0
    %v100 = vsel %vm77, %v70, 0
    %102 = vmatprep.subr.bf16.mxu0 0
    %103 = vmatpush1.bf16.msra.mxu0 0
    %104 = vmatprep.subr.bf16.mxu0 0
    %105 = vmatpush1.bf16.msra.mxu0 0
    %106 = vmatprep.subr.bf16.mxu0 0
    %107 = vmatpush1.bf16.msra.mxu0 0
    %108 = vmatprep.subr.bf16.mxu0 0
    %109 = vmatpush1.bf16.msra.mxu0 0
    %110 = vmatprep.subr.bf16.mxu0 0
    %111 = vmatpush1.bf16.msra.mxu0 0
    %112 = vmatprep.subr.bf16.mxu0 0
    %113 = vmatpush1.bf16.msra.mxu0 0
    %114 = vmatprep.subr.bf16.mxu0 0
    %115 = vmatpush1.bf16.msra.mxu0 0
    %116 = vmatprep.subr.bf16.mxu0 0
    %117 = vmatpush1.bf16.msra.mxu0 %v75
    %118 = vmatprep.subr.bf16.mxu0 0
    %119 = vmatpush2.bf16.msra.mxu0 0
    %120 = vmatprep.subr.bf16.mxu0 0
    %121 = vmatpush2.bf16.msra.mxu0 0
    %122 = vmatprep.subr.bf16.mxu0 0
    %123 = vmatpush2.bf16.msra.mxu0 0
    %124 = vmatprep.subr.bf16.mxu0 0
    %125 = vmatpush2.bf16.msra.mxu0 0
    %126 = vmatprep.subr.bf16.mxu0 0
    %127 = vmatpush2.bf16.msra.mxu0 0
    %128 = vmatprep.subr.bf16.mxu0 0
    %129 = vmatpush2.bf16.msra.mxu0 0
    %130 = vmatprep.subr.bf16.mxu0 0
    %131 = vmatpush2.bf16.msra.mxu0 0
    %132 = vmatprep.subr.bf16.mxu0 0
    %133 = vmatpush2.bf16.msra.mxu0 0
    %134 = vmatprep.mubr.bf16.mxu0 0
    %135 = vmatmul.mubr.bf16.gmra.mxu0 %v79
    %v136 = vpop.f32.mrf.mxu0
    %v137 = vadd.f32 0.0, %v136
    %v138 = vpop.f32.mrf.mxu0
    %v139 = vpop.f32.mrf.mxu0
    %v140 = vadd.f32 0.0, %v139
    %v141 = vpop.f32.mrf.mxu0
    %142 = vmatprep.mubr.bf16.mxu0 0
    %143 = vmatmul.mubr.bf16.gmra.mxu0 %v82
    %v144 = vpop.f32.mrf.mxu0
    %v145 = vadd.f32 0.0, %v144
    %v146 = vpop.f32.mrf.mxu0
    %v147 = vpop.f32.mrf.mxu0
    %v148 = vadd.f32 0.0, %v147
    %v149 = vpop.f32.mrf.mxu0
    %150 = vmatprep.mubr.bf16.mxu0 0
    %151 = vmatmul.mubr.bf16.gmra.mxu0 %v85
    %v152 = vpop.f32.mrf.mxu0
    %v153 = vadd.f32 0.0, %v152
    %v154 = vpop.f32.mrf.mxu0
    %v155 = vpop.f32.mrf.mxu0
    %v156 = vadd.f32 0.0, %v155
    %v157 = vpop.f32.mrf.mxu0
    %158 = vmatprep.mubr.bf16.mxu0 0
    %159 = vmatmul.mubr.bf16.gmra.mxu0 %v88
    %v160 = vpop.f32.mrf.mxu0
    %v161 = vadd.f32 0.0, %v160
    %v162 = vpop.f32.mrf.mxu0
    %v163 = vpop.f32.mrf.mxu0
    %v164 = vadd.f32 0.0, %v163
    %v165 = vpop.f32.mrf.mxu0
    %166 = vmatprep.mubr.bf16.mxu0 0
    %167 = vmatmul.mubr.bf16.gmra.mxu0 %v91
    %v168 = vpop.f32.mrf.mxu0
    %v169 = vadd.f32 0.0, %v168
    %v170 = vpop.f32.mrf.mxu0
    %v171 = vpop.f32.mrf.mxu0
    %v172 = vadd.f32 0.0, %v171
    %v173 = vpop.f32.mrf.mxu0
    %174 = vmatprep.mubr.bf16.mxu0 0
    %175 = vmatmul.mubr.bf16.gmra.mxu0 %v94
    %v176 = vpop.f32.mrf.mxu0
    %v177 = vadd.f32 0.0, %v176
    %v178 = vpop.f32.mrf.mxu0
    %v179 = vpop.f32.mrf.mxu0
    %v180 = vadd.f32 0.0, %v179
    %v181 = vpop.f32.mrf.mxu0
    %182 = vmatprep.mubr.bf16.mxu0 0
    %183 = vmatmul.mubr.bf16.gmra.mxu0 %v97
    %v184 = vpop.f32.mrf.mxu0
    %v185 = vadd.f32 0.0, %v184
    %v186 = vpop.f32.mrf.mxu0
    %v187 = vpop.f32.mrf.mxu0
    %v188 = vadd.f32 0.0, %v187
    %v189 = vpop.f32.mrf.mxu0
    %190 = vmatprep.mubr.bf16.mxu0 0
    %191 = vmatmul.mubr.bf16.gmra.mxu0 %v100
    %v192 = vpop.f32.mrf.mxu0
    %v193 = vadd.f32 0.0, %v192
    %v194 = vpop.f32.mrf.mxu0
    %v195 = vpop.f32.mrf.mxu0
    %v196 = vadd.f32 0.0, %v195
    %v197 = vpop.f32.mrf.mxu0
    %198 = vdwg.mxu0
    %vm199 = vcmask 261120
    %v200 = vsel %vm199, %v137, 0.0
    %v201 = vsel %vm199, %v140, 0.0
    %v202 = vadd.f32 %v200, %v201
    %v203 = vsel %vm199, %v145, 0.0
    %v204 = vadd.f32 %v202, %v203
    %v205 = vsel %vm199, %v148, 0.0
    %v206 = vadd.f32 %v204, %v205
    %v207 = vsel %vm199, %v153, 0.0
    %v208 = vadd.f32 %v206, %v207
    %v209 = vsel %vm199, %v156, 0.0
    %v210 = vadd.f32 %v208, %v209
    %v211 = vsel %vm199, %v161, 0.0
    %v212 = vadd.f32 %v210, %v211
    %v213 = vsel %vm199, %v164, 0.0
    %v214 = vadd.f32 %v212, %v213
    %v215 = vsel %vm199, %v169, 0.0
    %v216 = vadd.f32 %v214, %v215
    %v217 = vsel %vm199, %v172, 0.0
    %v218 = vadd.f32 %v216, %v217
    %v219 = vsel %vm199, %v177, 0.0
    %v220 = vadd.f32 %v218, %v219
    %v221 = vsel %vm199, %v180, 0.0
    %v222 = vadd.f32 %v220, %v221
    %v223 = vsel %vm199, %v185, 0.0
    %v224 = vadd.f32 %v222, %v223
    %v225 = vsel %vm199, %v188, 0.0
    %v226 = vadd.f32 %v224, %v225
    %v227 = vsel %vm199, %v193, 0.0
    %v228 = vadd.f32 %v226, %v227
    %v229 = vsel %vm199, %v196, 0.0
    %v230 = vadd.f32 %v228, %v229
    %231 = vadd.xlane.f32.xlu0 %v230
    %v232 = vpop.xlane.xlu0 %231
    %v233 = vrot.slane %v232, 4
    %v234 = vadd.f32 %v232, %v233
    %v235 = vrot.slane %v234, 2
    %v236 = vadd.f32 %v234, %v235
    %v237 = vrot.slane %v236, 1
    %v238 = vadd.f32 %v236, %v237
    %s239 = vtos %v238
    %s240 = scalar_lea.smem [#allocation2], 0
    %241 = sst [smem:[%s240]] %s239
    %v242 = vmul.f32 %v137, %v137
    %v243 = vmul.f32 %v140, %v140
    %v244 = vmul.f32 %v145, %v145
    %v245 = vmul.f32 %v148, %v148
    %v246 = vmul.f32 %v153, %v153
    %v247 = vmul.f32 %v156, %v156
    %v248 = vmul.f32 %v161, %v161
    %v249 = vmul.f32 %v164, %v164
    %v250 = vmul.f32 %v169, %v169
    %v251 = vmul.f32 %v172, %v172
    %v252 = vmul.f32 %v177, %v177
    %v253 = vmul.f32 %v180, %v180
    %v254 = vmul.f32 %v185, %v185
    %v255 = vmul.f32 %v188, %v188
    %v256 = vmul.f32 %v193, %v193
    %v257 = vmul.f32 %v196, %v196
    %v258 = vsel %vm199, %v242, 0.0
    %v259 = vsel %vm199, %v243, 0.0
    %v260 = vadd.f32 %v258, %v259
    %v261 = vsel %vm199, %v244, 0.0
    %v262 = vadd.f32 %v260, %v261
    %v263 = vsel %vm199, %v245, 0.0
    %v264 = vadd.f32 %v262, %v263
    %v265 = vsel %vm199, %v246, 0.0
    %v266 = vadd.f32 %v264, %v265
    %v267 = vsel %vm199, %v247, 0.0
    %v268 = vadd.f32 %v266, %v267
    %v269 = vsel %vm199, %v248, 0.0
    %v270 = vadd.f32 %v268, %v269
    %v271 = vsel %vm199, %v249, 0.0
    %v272 = vadd.f32 %v270, %v271
    %v273 = vsel %vm199, %v250, 0.0
    %v274 = vadd.f32 %v272, %v273
    %v275 = vsel %vm199, %v251, 0.0
    %v276 = vadd.f32 %v274, %v275
    %v277 = vsel %vm199, %v252, 0.0
    %v278 = vadd.f32 %v276, %v277
    %v279 = vsel %vm199, %v253, 0.0
    %v280 = vadd.f32 %v278, %v279
    %v281 = vsel %vm199, %v254, 0.0
    %v282 = vadd.f32 %v280, %v281
    %v283 = vsel %vm199, %v255, 0.0
    %v284 = vadd.f32 %v282, %v283
    %v285 = vsel %vm199, %v256, 0.0
    %v286 = vadd.f32 %v284, %v285
    %v287 = vsel %vm199, %v257, 0.0
    %v288 = vadd.f32 %v286, %v287
    %289 = vadd.xlane.f32.xlu0 %v288
    %v290 = vpop.xlane.xlu0 %289
    %v291 = vrot.slane %v290, 4
    %v292 = vadd.f32 %v290, %v291
    %v293 = vrot.slane %v292, 2
    %v294 = vadd.f32 %v292, %v293
    %v295 = vrot.slane %v294, 1
    %v296 = vadd.f32 %v294, %v295
    %s297 = vtos %v296
    %s298 = scalar_lea.smem [#allocation2], 1
    %299 = sst [smem:[%s298]] %s297
    // Predicated region
    $region10: #{tpu_custom_call.1} parent=1 // pred_check
      _
    $region11: #{tpu_custom_call.1} parent=1 // pred_check_branch
      %301 = sbr.rel (0) target = $region13
    $region12: #{tpu_custom_call.1} parent=1 // pred_region
      %s303 = ssub.s32 16, 16
      %304 = vsyncadd [#allocation3], %s303
      %307 = dma.smem_to_hbm [#allocation2], 16, %s2, [#allocation3]
    $region13: #{tpu_custom_call.1} parent=1 // pred_fallthru
      _
    // Predicated region
    $region14: #{tpu_custom_call.1} parent=1 // pred_check
      _
    $region15: #{tpu_custom_call.1} parent=1 // pred_check_branch
      %309 = sbr.rel (0) target = $region17
    $region16: #{tpu_custom_call.1} parent=1 // pred_region
      %310 = dma.done [#allocation3], 16
    $region17: #{tpu_custom_call.1} parent=1 // pred_fallthru
      _
    %311 = sfence
    %312 = vsyncpa [#allocation3], 1

</llo_original>
